<compile_context>
chip_gen: v6e
topology: v6e:2x2x1
jax: 0.10.0
libtpu: 0.0.40
codegen_flags: <defaults>
</compile_context>

<pallas_src>
import functools

import jax
import jax.numpy as jnp
from jax.experimental import pallas as pl
from jax.experimental.pallas import tpu as pltpu


# ----------------------------------------------------------------------------
# Hardware probing (defensive: fall back to conservative defaults).
# ----------------------------------------------------------------------------
def _vmem_capacity_bytes():
    try:
        info = pltpu.get_tpu_info()
        cap = getattr(info, "vmem_capacity_bytes", None)
        if cap:
            return int(cap)
    except Exception:
        pass
    return 64 << 20  # conservative: v7x per-TensorCore VMEM


def _num_tensorcores():
    try:
        info = pltpu.get_tpu_info()
        for attr in ("num_cores", "num_tensorcores", "core_count"):
            v = getattr(info, attr, None)
            if isinstance(v, int) and v > 0:
                return min(int(v), 2)
    except Exception:
        pass
    try:
        d = jax.devices()[0]
        for attr in ("num_cores", "core_count"):
            v = getattr(d, attr, None)
            if isinstance(v, int) and v > 0:
                return min(int(v), 2)
    except Exception:
        pass
    return 1


# ----------------------------------------------------------------------------
# Tiling plan.
# ----------------------------------------------------------------------------
def _largest_multiple8_divisor(n, limit):
    """Largest multiple-of-8 divisor of n that is <= limit (n % 8 == 0)."""
    cand = (min(limit, n) // 8) * 8
    while cand >= 8:
        if n % cand == 0:
            return cand
        cand -= 8
    return 8


def _plan(rows, budget_rows, num_splits):
    """Return (num_splits, tile_rows, steps_per_split, needs_mask) for the
    vector path, or None when the tiny-input fallback kernel should be used."""
    if rows < 8:
        return None
    candidates = [num_splits, 1] if num_splits > 1 else [1]
    for ns in candidates:
        if rows % ns != 0:
            continue
        rps = rows // ns                      # rows handled by each split
        if rps % 8 != 0:
            continue
        div = _largest_multiple8_divisor(rps, budget_rows)
        # Use the divisor tile when it is reasonably close to the budget (or
        # the whole per-split slab fits in one block): no ragged-tail masking.
        if rps <= budget_rows or div * 4 >= budget_rows:
            return ns, div, rps // div, False
    # No clean divisor tiling: budget-sized tiles, mask the ragged tail.
    tile = min(budget_rows, (rows // 8) * 8)
    return 1, tile, pl.cdiv(rows, tile), rows % tile != 0


# ----------------------------------------------------------------------------
# Kernels.
# ----------------------------------------------------------------------------
def _dice_partial_kernel(pred_ref, gt_ref, mask_ref, part_ref, *,
                         needs_mask, total_rows):
    """One grid step: accumulate (8, lane) partial sums for the three terms.

    part_ref block is (1, 3, 8, lane) f32 and stays resident across the
    reduction axis (grid axis 1) — output-as-accumulator pattern.
    """
    i = pl.program_id(1)

    @pl.when(i == 0)
    def _init():
        part_ref[...] = jnp.zeros_like(part_ref)

    p = pred_ref[...].astype(jnp.float32)
    g = gt_ref[...].astype(jnp.float32)
    m = mask_ref[...].astype(jnp.float32)
    t, l = p.shape

    if needs_mask:
        # Ragged last block: out-of-bounds rows hold undefined data.  Zero all
        # three factors (NaN * 0 == NaN would otherwise poison the sums).
        n = pl.num_programs(1)
        c = pl.program_id(0)
        row0 = (c * n + i) * t
        row_ids = jax.lax.broadcasted_iota(jnp.int32, (t, l), 0) + row0
        valid = row_ids < total_rows
        zero = jnp.float32(0.0)
        p = jnp.where(valid, p, zero)
        g = jnp.where(valid, g, zero)
        m = jnp.where(valid, m, zero)

    pm = p * m
    # (t, l) -> (t//8, 8, l) keeps sublane alignment, so the axis-0 reduction
    # lowers to plain VPU adds: no XLU work and no scalar RMW chain per step.
    part_ref[0, 0] += jnp.sum((pm * g).reshape(t // 8, 8, l), axis=0)
    part_ref[0, 1] += jnp.sum(pm.reshape(t // 8, 8, l), axis=0)
    part_ref[0, 2] += jnp.sum((g * m).reshape(t // 8, 8, l), axis=0)


def _dice_small_kernel(pred_ref, gt_ref, mask_ref, out_ref):
    """Single-step fallback for tiny inputs (fewer than 8 rows)."""
    p = pred_ref[...].astype(jnp.float32)
    g = gt_ref[...].astype(jnp.float32)
    m = mask_ref[...].astype(jnp.float32)
    pm = p * m
    out_ref[0] = jnp.sum(pm * g)
    out_ref[1] = jnp.sum(pm)
    out_ref[2] = jnp.sum(g * m)


# ----------------------------------------------------------------------------
# Wrapper.
# ----------------------------------------------------------------------------
def dice_loss(pred, gt, mask, eps=1e-6, target_block_bytes=None, num_splits=None):
    """Pallas DiceLoss forward. pred: (B,1,H,W) or (B,H,W); gt, mask: (B,H,W)."""
    if pred.ndim == 4:
        pred = pred[:, 0, :, :]
    assert pred.shape == gt.shape
    assert pred.shape == mask.shape
    B, H, W = pred.shape
    n_elems = B * H * W
    itemsize = max(jnp.dtype(pred.dtype).itemsize,
                   jnp.dtype(gt.dtype).itemsize,
                   jnp.dtype(mask.dtype).itemsize)

    # --- per-generation sizing ----------------------------------------------
    vmem_cap = _vmem_capacity_bytes()            # 64 MiB (v7x) / 128 MiB (v5e/v6e)
    vmem_ceiling = int(vmem_cap * 0.85)          # headroom for compiler scratch
    if target_block_bytes is None:
        # 3 inputs x 2 pipeline buffers per step must fit under the ceiling.
        target_block_bytes = min(16 << 20,
                                 max(1 << 20, (vmem_ceiling - (4 << 20)) // 6))
    if num_splits is None:
        num_splits = _num_tensorcores()

    # --- lane-dense layout (lane capped at 512 for vreg pressure) ------------
    lane = None
    for cand in (512, 256, 128):
        if n_elems % cand == 0 and (n_elems // cand) % 8 == 0:
            lane = cand
            break
    if lane is None:
        for cand in (512, 256, 128):
            if n_elems % cand == 0:
                lane = cand
                break
    if lane is not None:
        rows, cols = n_elems // lane, lane
    else:
        rows, cols = B * H, W                    # fallback: natural 2D slab

    pred2 = pred.reshape(rows, cols)
    gt2 = gt.reshape(rows, cols)
    mask2 = mask.reshape(rows, cols)

    budget_rows = max(8, (target_block_bytes // (cols * itemsize)) // 8 * 8)
    plan = _plan(rows, budget_rows, num_splits)

    cost = pl.CostEstimate(flops=6 * n_elems, transcendentals=0,
                           bytes_accessed=3 * n_elems * itemsize + 3 * 8 * cols * 4)

    if plan is None:
        # Tiny input: one step, whole slab in VMEM, scalar sums to SMEM.
        sums = pl.pallas_call(
            _dice_small_kernel,
            out_shape=jax.ShapeDtypeStruct((3,), jnp.float32),
            grid_spec=pltpu.PrefetchScalarGridSpec(
                num_scalar_prefetch=0,
                grid=(1,),
                in_specs=[pl.BlockSpec((rows, cols), lambda i: (0, 0))] * 3,
                out_specs=pl.BlockSpec(memory_space=pltpu.MemorySpace.SMEM),
            ),
            compiler_params=pltpu.CompilerParams(
                dimension_semantics=("arbitrary",),
                vmem_limit_bytes=vmem_ceiling,
            ),
            cost_estimate=cost,
        )(pred2, gt2, mask2)
        return 1.0 - 2.0 * sums[0] / (sums[1] + sums[2] + jnp.float32(eps))

    ns, tile_rows, sps, needs_mask = plan
    block_bytes = tile_rows * cols * itemsize
    vmem_limit = int(min(max(6 * block_bytes + (4 << 20), 32 << 20), vmem_ceiling))

    kernel = functools.partial(_dice_partial_kernel,
                               needs_mask=needs_mask, total_rows=rows)

    in_spec = pl.BlockSpec((tile_rows, cols), lambda c, i: (c * sps + i, 0))
    out_spec = pl.BlockSpec((1, 3, 8, cols), lambda c, i: (c, 0, 0, 0))

    partials = pl.pallas_call(
        kernel,
        out_shape=jax.ShapeDtypeStruct((ns, 3, 8, cols), jnp.float32),
        grid_spec=pltpu.PrefetchScalarGridSpec(
            num_scalar_prefetch=0,
            grid=(ns, sps),
            in_specs=[in_spec, in_spec, in_spec],
            out_specs=out_spec,
        ),
        compiler_params=pltpu.CompilerParams(
            dimension_semantics=("parallel", "arbitrary"),
            vmem_limit_bytes=vmem_limit,
        ),
        cost_estimate=cost,
    )(pred2, gt2, mask2)

    # Final cross-lane/cross-split reduce + combine: tiny, done in plain jnp.
    sums = jnp.sum(partials, axis=(0, 2, 3))     # (3,): interp, sum(pm), sum(gm)
    return 1.0 - 2.0 * sums[0] / (sums[1] + sums[2] + jnp.float32(eps))


def _reference(pred, gt, mask, eps=1e-6):
    if pred.ndim == 4:
        pred = pred[:, 0, :, :]
    interp = jnp.sum(pred * gt * mask)
    union = jnp.sum(pred * mask) + jnp.sum(gt * mask) + eps
    return 1.0 - 2.0 * interp / union


def _make_inputs(key, B, H, W):
    k1, k2, k3 = jax.random.split(key, 3)
    pred = jax.nn.sigmoid(jax.random.normal(k1, (B, 1, H, W), dtype=jnp.float32))
    gt = (jax.random.uniform(k2, (B, H, W)) > 0.5).astype(jnp.float32)
    mask = (jax.random.uniform(k3, (B, H, W)) > 0.2).astype(jnp.float32)
    return pred, gt, mask


if __name__ == "__main__":
    key = jax.random.PRNGKey(0)
    keys = jax.random.split(key, 4)

    # Case 1: module-sized input (B,1,H,W), only 512 elements -> tiny fallback.
    pred, gt, mask = _make_inputs(keys[0], 2, 16, 16)
    loss = dice_loss(pred, gt, mask)
    jax.block_until_ready(loss)
    ref = _reference(pred, gt, mask)
    assert jnp.allclose(loss, ref, atol=1e-5, rtol=1e-5), (loss, ref)

    # Case 2: lane-dense vector path. Run once with full auto sizing and once
    # with a tiny block budget to force a multi-step reduction grid.
    pred, gt, mask = _make_inputs(keys[1], 2, 32, 128)
    ref = _reference(pred, gt, mask)
    loss = dice_loss(pred, gt, mask)
    jax.block_until_ready(loss)
    assert jnp.allclose(loss, ref, atol=1e-5, rtol=1e-5), (loss, ref)
    loss = dice_loss(pred, gt, mask, target_block_bytes=8 * 512 * 4)
    jax.block_until_ready(loss)
    assert jnp.allclose(loss, ref, atol=1e-5, rtol=1e-5), (loss, ref)

    # Case 3: forced 2-way split (exercises the per-core partial-sum path;
    # runs sequentially but correctly on 1-TensorCore chips).
    pred, gt, mask = _make_inputs(keys[2], 2, 64, 128)
    loss = dice_loss(pred, gt, mask, target_block_bytes=8 * 512 * 4, num_splits=2)
    jax.block_until_ready(loss)
    ref = _reference(pred, gt, mask)
    assert jnp.allclose(loss, ref, atol=1e-5, rtol=1e-5), (loss, ref)

    # Case 4: odd spatial size + tiny block budget -> fallback (B*H, W) layout,
    # multi-step grid and the ragged-tail row mask.
    pred, gt, mask = _make_inputs(keys[3], 2, 10, 100)
    loss = dice_loss(pred, gt, mask, target_block_bytes=8 * 100 * 4)
    jax.block_until_ready(loss)
    ref = _reference(pred, gt, mask)
    assert jnp.allclose(loss, ref, atol=1e-5, rtol=1e-5), (loss, ref)

    print("KERNEL_OK")
</pallas_src>

<mosaic_0001>
module attributes {stable_mosaic.version = 11 : i64} {
  func.func @_dice_small_kernel(%arg0: i32, %arg1: memref<1x512xf32, #tpu.memory_space<vmem>>, %arg2: memref<1x512xf32, #tpu.memory_space<vmem>>, %arg3: memref<1x512xf32, #tpu.memory_space<vmem>>, %arg4: memref<3xf32, #tpu.memory_space<smem>>) attributes {dimension_semantics = [#tpu.dimension_semantics<arbitrary>], iteration_bounds = array<i64: 1>, scalar_prefetch = 0 : i64, scratch_operands = 0 : i64, tpu.core_type = #tpu.core_type<tc>, window_params = [{pipeline_mode = #tpu.pipeline_mode<synchronous>, transform_indices = @transform_0, window_bounds = array<i64: 1, 512>}, {pipeline_mode = #tpu.pipeline_mode<synchronous>, transform_indices = @transform_1, window_bounds = array<i64: 1, 512>}, {pipeline_mode = #tpu.pipeline_mode<synchronous>, transform_indices = @transform_2, window_bounds = array<i64: 1, 512>}, {transform_indices = @transform_3, window_bounds = array<i64: 3>}]} {
    %c0 = arith.constant 0 : index
    %c0_0 = arith.constant 0 : index
    %0 = vector.load %arg1[%c0, %c0_0] : memref<1x512xf32, #tpu.memory_space<vmem>>, vector<1x512xf32>
    %c0_1 = arith.constant 0 : index
    %c0_2 = arith.constant 0 : index
    %1 = vector.load %arg2[%c0_1, %c0_2] : memref<1x512xf32, #tpu.memory_space<vmem>>, vector<1x512xf32>
    %c0_3 = arith.constant 0 : index
    %c0_4 = arith.constant 0 : index
    %2 = vector.load %arg3[%c0_3, %c0_4] : memref<1x512xf32, #tpu.memory_space<vmem>>, vector<1x512xf32>
    %3 = arith.mulf %0, %2 : vector<1x512xf32>
    %4 = arith.mulf %3, %1 : vector<1x512xf32>
    %5 = vector.shape_cast %4 : vector<1x512xf32> to vector<1x1x512xf32>
    %cst = arith.constant dense<0.000000e+00> : vector<1xf32>
    %6 = vector.multi_reduction <add>, %5, %cst [1, 2] : vector<1x1x512xf32> to vector<1xf32>
    %7 = vector.shape_cast %6 : vector<1xf32> to vector<1x1x1xf32>
    %8 = vector.extract %7[0, 0, 0] : f32 from vector<1x1x1xf32>
    %c0_5 = arith.constant 0 : index
    %9 = memref.load %arg4[%c0_5] : memref<3xf32, #tpu.memory_space<smem>>
    memref.store %8, %arg4[%c0_5] : memref<3xf32, #tpu.memory_space<smem>>
    %10 = vector.shape_cast %3 : vector<1x512xf32> to vector<1x1x512xf32>
    %cst_6 = arith.constant dense<0.000000e+00> : vector<1xf32>
    %11 = vector.multi_reduction <add>, %10, %cst_6 [1, 2] : vector<1x1x512xf32> to vector<1xf32>
    %12 = vector.shape_cast %11 : vector<1xf32> to vector<1x1x1xf32>
    %13 = vector.extract %12[0, 0, 0] : f32 from vector<1x1x1xf32>
    %c1 = arith.constant 1 : index
    %14 = memref.load %arg4[%c1] : memref<3xf32, #tpu.memory_space<smem>>
    memref.store %13, %arg4[%c1] : memref<3xf32, #tpu.memory_space<smem>>
    %15 = arith.mulf %1, %2 : vector<1x512xf32>
    %16 = vector.shape_cast %15 : vector<1x512xf32> to vector<1x1x512xf32>
    %cst_7 = arith.constant dense<0.000000e+00> : vector<1xf32>
    %17 = vector.multi_reduction <add>, %16, %cst_7 [1, 2] : vector<1x1x512xf32> to vector<1xf32>
    %18 = vector.shape_cast %17 : vector<1xf32> to vector<1x1x1xf32>
    %19 = vector.extract %18[0, 0, 0] : f32 from vector<1x1x1xf32>
    %c2 = arith.constant 2 : index
    %20 = memref.load %arg4[%c2] : memref<3xf32, #tpu.memory_space<smem>>
    memref.store %19, %arg4[%c2] : memref<3xf32, #tpu.memory_space<smem>>
    return
  }
  func.func @transform_0(%arg0: i32) -> (i32, i32) {
    %c0_i32 = arith.constant 0 : i32
    %c0_i32_0 = arith.constant 0 : i32
    %c0_i32_1 = arith.constant 0 : i32
    return %c0_i32, %c0_i32_0 : i32, i32
  }
  func.func @transform_1(%arg0: i32) -> (i32, i32) {
    %c0_i32 = arith.constant 0 : i32
    %c0_i32_0 = arith.constant 0 : i32
    %c0_i32_1 = arith.constant 0 : i32
    return %c0_i32, %c0_i32_0 : i32, i32
  }
  func.func @transform_2(%arg0: i32) -> (i32, i32) {
    %c0_i32 = arith.constant 0 : i32
    %c0_i32_0 = arith.constant 0 : i32
    %c0_i32_1 = arith.constant 0 : i32
    return %c0_i32, %c0_i32_0 : i32, i32
  }
  func.func @transform_3(%arg0: i32) -> i32 {
    %c0_i32 = arith.constant 0 : i32
    %c0_i32_0 = arith.constant 0 : i32
    return %c0_i32 : i32
  }
}

</mosaic_0001>

<llo_original>
// kernel: tpu_custom_call.1
$region0: #{tpu_custom_call.1}
  #allocation0 [shape = 'u32[]', space=smem, size = 0x4, offset = 0x4, fixed_abs, tag = 'smem constant byte address 0x4 - core index']
  #allocation1 [shape = 'u32[144,128]{1,0:T(1,128)}', space=vmem, size = 0x12000, scoped, tag = 'internal scratch']
  %s0 = inlined_call_operand.hbm [shape: f32[1,512], index: 0, kind: input, shape index: {}]
  %s1 = inlined_call_operand.hbm [shape: f32[1,512], index: 1, kind: input, shape index: {}]
  %s2 = inlined_call_operand.hbm [shape: f32[1,512], index: 2, kind: input, shape index: {}]
  %s3 = inlined_call_operand.hbm [shape: f32[3], index: 3, kind: output, shape index: {}]
  %s4 = sld [smem:[#allocation0]]
  $region34: #{tpu_custom_call.1} parent=0
    _
  %s6 = ssub.s32 1, %s4
  %s7 = scalar_select 0, %s6, %s4
  $region1: #{tpu_custom_call.1} parent=0
    #allocation2 [shape = 'u8[2048]{0}', space=vmem, size = 0x800, scoped, tag = 'input window, operand 0, single buffered']
    #allocation3 [shape = 's32[1]{0}', space=sflag, size = 0x4, scoped, tag = 'scoped memory for tpu_custom_call.1']
    #allocation4 [shape = 's32[1]{0}', space=sflag, size = 0x4, scoped, tag = 'scoped memory for tpu_custom_call.1']
    #allocation5 [shape = 'u8[2048]{0}', space=vmem, size = 0x800, scoped, tag = 'input window, operand 1, single buffered']
    #allocation6 [shape = 's32[1]{0}', space=sflag, size = 0x4, scoped, tag = 'scoped memory for tpu_custom_call.1']
    #allocation7 [shape = 'u8[2048]{0}', space=vmem, size = 0x800, scoped, tag = 'input window, operand 2, single buffered']
    #allocation8 [shape = 'u8[512]{0}', space=smem, size = 0x200, scoped, tag = 'output window, operand 0, single buffered']
    %8 = vsyncpa [#allocation3], 0
    %9 = vsyncpa [#allocation6], 0
    %10 = vsyncpa [#allocation4], 0
    // Predicated region
    $region2: #{tpu_custom_call.1} parent=1 // pred_check
      _
    $region3: #{tpu_custom_call.1} parent=1 // pred_check_branch
      %12 = sbr.rel (0) target = $region5
    $region4: #{tpu_custom_call.1} parent=1 // pred_region
      %s14 = ssub.s32 64, 64
      %15 = vsyncadd [#allocation3], %s14
      %s17 = sshll.u32 [#allocation2], 4
      %s18 = int_to_ptr.vmem [resolvable:$true] %s17
      %20 = dma.hbm_to_vmem [thread:$0]  %s0, 64, %s18, [#allocation3]
    $region5: #{tpu_custom_call.1} parent=1 // pred_fallthru
      _
    // Predicated region
    $region6: #{tpu_custom_call.1} parent=1 // pred_check
      _
    $region7: #{tpu_custom_call.1} parent=1 // pred_check_branch
      %22 = sbr.rel (0) target = $region9
    $region8: #{tpu_custom_call.1} parent=1 // pred_region
      %s24 = ssub.s32 64, 64
      %25 = vsyncadd [#allocation6], %s24
      %s27 = sshll.u32 [#allocation5], 4
      %s28 = int_to_ptr.vmem [resolvable:$true] %s27
      %30 = dma.hbm_to_vmem [thread:$0]  %s1, 64, %s28, [#allocation6]
    $region9: #{tpu_custom_call.1} parent=1 // pred_fallthru
      _
    // Predicated region
    $region10: #{tpu_custom_call.1} parent=1 // pred_check
      _
    $region11: #{tpu_custom_call.1} parent=1 // pred_check_branch
      %32 = sbr.rel (0) target = $region13
    $region12: #{tpu_custom_call.1} parent=1 // pred_region
      %s34 = ssub.s32 64, 64
      %35 = vsyncadd [#allocation6], %s34
      %s37 = sshll.u32 [#allocation7], 4
      %s38 = int_to_ptr.vmem [resolvable:$true] %s37
      %40 = dma.hbm_to_vmem [thread:$0]  %s2, 64, %s38, [#allocation6]
    $region13: #{tpu_custom_call.1} parent=1 // pred_fallthru
      _
    // Predicated region
    $region14: #{tpu_custom_call.1} parent=1 // pred_check
      _
    $region15: #{tpu_custom_call.1} parent=1 // pred_check_branch
      %42 = sbr.rel (0) target = $region17
    $region16: #{tpu_custom_call.1} parent=1 // pred_region
      %43 = dma.done [#allocation3], 64
    $region17: #{tpu_custom_call.1} parent=1 // pred_fallthru
      _
    // Predicated region
    $region18: #{tpu_custom_call.1} parent=1 // pred_check
      _
    $region19: #{tpu_custom_call.1} parent=1 // pred_check_branch
      %45 = sbr.rel (0) target = $region21
    $region20: #{tpu_custom_call.1} parent=1 // pred_region
      %46 = dma.done [#allocation6], 64
    $region21: #{tpu_custom_call.1} parent=1 // pred_fallthru
      _
    // Predicated region
    $region22: #{tpu_custom_call.1} parent=1 // pred_check
      _
    $region23: #{tpu_custom_call.1} parent=1 // pred_check_branch
      %48 = sbr.rel (0) target = $region25
    $region24: #{tpu_custom_call.1} parent=1 // pred_region
      %49 = dma.done [#allocation6], 64
    $region25: #{tpu_custom_call.1} parent=1 // pred_fallthru
      _
    %v50 = vld [vmem:[#allocation2] sm:$0xf]
    %v51 = vld [vmem:[#allocation5] sm:$0xf]
    %v52 = vld [vmem:[#allocation7] sm:$0xf]
    %v53 = vmul.f32 %v50, %v52
    %v54 = vmul.f32 %v53, %v51
    %v56 = vlaneseq
    %v57 = vshrl.u32 %v56, 7
    %v58 = vsub.s32 0, %v57
    %v59 = vrot.slane %v54, %v58
    %v60 = vlaneseq
    %v61 = vshrl.u32 %v60, 7
    %v62 = vsub.s32 1, %v61
    %v63 = vrot.slane %v54, %v62
    %v64 = vlaneseq
    %v65 = vshrl.u32 %v64, 7
    %v66 = vsub.s32 2, %v65
    %v67 = vrot.slane %v54, %v66
    %v68 = vlaneseq
    %v69 = vshrl.u32 %v68, 7
    %v70 = vsub.s32 3, %v69
    %v71 = vrot.slane %v54, %v70
    %vm76 = vcmask 1040384
    %v77 = vsel %vm76, %v59, 0.0
    %v78 = vsel %vm76, %v63, 0.0
    %v79 = vadd.f32 %v77, %v78
    %v80 = vsel %vm76, %v67, 0.0
    %v81 = vadd.f32 %v79, %v80
    %v82 = vsel %vm76, %v71, 0.0
    %v83 = vadd.f32 %v81, %v82
    %84 = vadd.xlane.f32.xlu0 %v83
    %v85 = vpop.xlane.xlu0 %84
    %v86 = vrot.slane %v85, 4
    %v87 = vadd.f32 %v85, %v86
    %v88 = vrot.slane %v87, 2
    %v89 = vadd.f32 %v87, %v88
    %v90 = vrot.slane %v89, 1
    %v91 = vadd.f32 %v89, %v90
    %s92 = vtos %v91
    %s93 = scalar_lea.smem [#allocation8], 0
    %94 = sst [smem:[%s93]] %s92
    %v96 = vlaneseq
    %v97 = vshrl.u32 %v96, 7
    %v98 = vsub.s32 0, %v97
    %v99 = vrot.slane %v53, %v98
    %v100 = vlaneseq
    %v101 = vshrl.u32 %v100, 7
    %v102 = vsub.s32 1, %v101
    %v103 = vrot.slane %v53, %v102
    %v104 = vlaneseq
    %v105 = vshrl.u32 %v104, 7
    %v106 = vsub.s32 2, %v105
    %v107 = vrot.slane %v53, %v106
    %v108 = vlaneseq
    %v109 = vshrl.u32 %v108, 7
    %v110 = vsub.s32 3, %v109
    %v111 = vrot.slane %v53, %v110
    %v116 = vsel %vm76, %v99, 0.0
    %v117 = vsel %vm76, %v103, 0.0
    %v118 = vadd.f32 %v116, %v117
    %v119 = vsel %vm76, %v107, 0.0
    %v120 = vadd.f32 %v118, %v119
    %v121 = vsel %vm76, %v111, 0.0
    %v122 = vadd.f32 %v120, %v121
    %123 = vadd.xlane.f32.xlu0 %v122
    %v124 = vpop.xlane.xlu0 %123
    %v125 = vrot.slane %v124, 4
    %v126 = vadd.f32 %v124, %v125
    %v127 = vrot.slane %v126, 2
    %v128 = vadd.f32 %v126, %v127
    %v129 = vrot.slane %v128, 1
    %v130 = vadd.f32 %v128, %v129
    %s131 = vtos %v130
    %s132 = scalar_lea.smem [#allocation8], 1
    %133 = sst [smem:[%s132]] %s131
    %v134 = vmul.f32 %v51, %v52
    %v136 = vlaneseq
    %v137 = vshrl.u32 %v136, 7
    %v138 = vsub.s32 0, %v137
    %v139 = vrot.slane %v134, %v138
    %v140 = vlaneseq
    %v141 = vshrl.u32 %v140, 7
    %v142 = vsub.s32 1, %v141
    %v143 = vrot.slane %v134, %v142
    %v144 = vlaneseq
    %v145 = vshrl.u32 %v144, 7
    %v146 = vsub.s32 2, %v145
    %v147 = vrot.slane %v134, %v146
    %v148 = vlaneseq
    %v149 = vshrl.u32 %v148, 7
    %v150 = vsub.s32 3, %v149
    %v151 = vrot.slane %v134, %v150
    %v156 = vsel %vm76, %v139, 0.0
    %v157 = vsel %vm76, %v143, 0.0
    %v158 = vadd.f32 %v156, %v157
    %v159 = vsel %vm76, %v147, 0.0
    %v160 = vadd.f32 %v158, %v159
    %v161 = vsel %vm76, %v151, 0.0
    %v162 = vadd.f32 %v160, %v161
    %163 = vadd.xlane.f32.xlu0 %v162
    %v164 = vpop.xlane.xlu0 %163
    %v165 = vrot.slane %v164, 4
    %v166 = vadd.f32 %v164, %v165
    %v167 = vrot.slane %v166, 2
    %v168 = vadd.f32 %v166, %v167
    %v169 = vrot.slane %v168, 1
    %v170 = vadd.f32 %v168, %v169
    %s171 = vtos %v170
    %s172 = scalar_lea.smem [#allocation8], 2
    %173 = sst [smem:[%s172]] %s171
    // Predicated region
    $region26: #{tpu_custom_call.1} parent=1 // pred_check
      _
    $region27: #{tpu_custom_call.1} parent=1 // pred_check_branch
      %175 = sbr.rel (0) target = $region29
    $region28: #{tpu_custom_call.1} parent=1 // pred_region
      %s177 = ssub.s32 16, 16
      %178 = vsyncadd [#allocation4], %s177
      %181 = dma.smem_to_hbm [#allocation8], 16, %s3, [#allocation4]
    $region29: #{tpu_custom_call.1} parent=1 // pred_fallthru
      _
    // Predicated region
    $region30: #{tpu_custom_call.1} parent=1 // pred_check
      _
    $region31: #{tpu_custom_call.1} parent=1 // pred_check_branch
      %183 = sbr.rel (0) target = $region33
    $region32: #{tpu_custom_call.1} parent=1 // pred_region
      %184 = dma.done [#allocation4], 16
    $region33: #{tpu_custom_call.1} parent=1 // pred_fallthru
      _
    %185 = sfence
    %186 = vsyncpa [#allocation3], 1
    %187 = vsyncpa [#allocation6], 1
    %188 = vsyncpa [#allocation4], 1

</llo_original>
